<compile_context>
chip_gen: v6e
topology: v6e:2x2x1
jax: 0.10.0
libtpu: 0.0.40
codegen_flags: <defaults>
</compile_context>

<pallas_src>
import jax
import jax.numpy as jnp
from jax.experimental import pallas as pl
from jax.experimental.pallas import tpu as pltpu


# ---------------------------------------------------------------------------
# Kernels
# ---------------------------------------------------------------------------

def _drop_path_kernel(x_ref, scale_ref, o_ref):
    # x_ref:     (TB, TF) tile of the flattened input (x.dtype)
    # scale_ref: (TB, 1)  per-sample scale, 0 or 1/keep_prob, float32
    o_ref[...] = (x_ref[...] * scale_ref[...]).astype(o_ref.dtype)


def _drop_path_add_kernel(r_ref, x_ref, scale_ref, o_ref):
    # Fused residual add: out = residual + x * scale   (one HBM pass)
    o_ref[...] = (r_ref[...] + x_ref[...] * scale_ref[...]).astype(o_ref.dtype)


# ---------------------------------------------------------------------------
# Tiling helpers
# ---------------------------------------------------------------------------

def _target_block_bytes():
    """~4 MiB blocks by default; ~6 MiB when VMEM capacity looks like v7x."""
    default = 4 * 1024 * 1024
    try:
        info = pltpu.get_tpu_info()
        vmem = int(getattr(info, "vmem_capacity_bytes", 0) or 0)
        if 0 < vmem <= 80 * 1024 * 1024:  # v7x: 64 MiB per TC, ~3.2 TB/s HBM
            return 6 * 1024 * 1024
    except Exception:
        pass
    return default


def _pick_tiles(B, F, dtype, target_bytes, min_blocks=2):
    """Pick (TB, TF): lane-dense, sublane-aligned, ~target_bytes per block.

    Uses cdiv-style tiling (tiles need not divide B / F; Pallas handles the
    ragged edge blocks).  Ensures >= min_blocks total grid blocks when the
    tensor is large enough, so v7x's two TensorCores both get work.
    """
    itemsize = jnp.dtype(dtype).itemsize
    # Sublane packing: 32-bit -> 8 rows/vreg, 16-bit -> 16, 8-bit -> 32.
    sub_mult = max(8, 32 // max(1, itemsize))
    target_elems = max(sub_mult * 128, target_bytes // max(1, itemsize))

    # Lane (feature) tile: full row if it fits the budget (legal for any F
    # since it equals the full dim), else a 128-multiple near the cap.
    lane_cap = max(128, (target_elems // sub_mult // 128) * 128)
    if F <= 128 or F <= lane_cap:
        TF = F
    else:
        TF = lane_cap

    # Sublane (batch) tile: as many rows as fit the budget, sublane-aligned.
    if B <= sub_mult:
        TB = B  # equals the full dim -> always legal
    else:
        TB = min(B, max(1, target_elems // max(TF, 1)))
        TB = max(sub_mult, (TB // sub_mult) * sub_mult)

    # Megacore: ensure >= min_blocks grid blocks (no-op on 1-TC chips).
    def nblocks(tb, tf):
        return pl.cdiv(B, tb) * pl.cdiv(F, tf)

    while nblocks(TB, TF) < min_blocks:
        if F > 128 and TF > 128:
            TF = 128 * max(1, pl.cdiv(pl.cdiv(F, 128), min_blocks))
        elif TB >= 2 * sub_mult:
            TB = sub_mult * max(1, pl.cdiv(TB // sub_mult, 2))
        else:
            break  # tensor too small to split legally; single block is fine
    return TB, TF


def _launch(kernel, data_arrays, scale, out_dtype):
    """Shared pallas_call driver for the scale / fused-add kernels."""
    B, F = data_arrays[0].shape
    TB, TF = _pick_tiles(B, F, out_dtype, _target_block_bytes())
    gb, gf = pl.cdiv(B, TB), pl.cdiv(F, TF)

    block_bytes = TB * TF * jnp.dtype(out_dtype).itemsize
    n_streams = len(data_arrays) + 1  # data inputs + output, each double-buffered
    vmem_limit = int(min(max(2 * n_streams * block_bytes + 4 * 1024 * 1024,
                             16 * 1024 * 1024),
                         48 * 1024 * 1024))

    data_spec = pl.BlockSpec((TB, TF), lambda i, j: (i, j))
    scale_spec = pl.BlockSpec((TB, 1), lambda i, j: (i, 0))

    return pl.pallas_call(
        kernel,
        out_shape=jax.ShapeDtypeStruct((B, F), out_dtype),
        grid=(gb, gf),
        in_specs=[data_spec] * len(data_arrays) + [scale_spec],
        out_specs=data_spec,
        compiler_params=pltpu.CompilerParams(
            dimension_semantics=("parallel", "parallel"),
            vmem_limit_bytes=vmem_limit,
        ),
    )(*data_arrays, scale)


# ---------------------------------------------------------------------------
# Public API
# ---------------------------------------------------------------------------

def _per_sample_scale(B, drop_prob, key, seed):
    """(B, 1) float32 scale: 0 (dropped) or 1/keep_prob (kept)."""
    keep_prob = 1.0 - drop_prob
    if key is None:
        # NOTE: repeated calls with the same default seed reuse the same mask;
        # thread explicit keys per layer/step in a real training loop.
        key = jax.random.PRNGKey(seed)
    u = jax.random.uniform(key, (B, 1), dtype=jnp.float32)
    mask = jnp.floor(jnp.float32(keep_prob) + u)  # 1 w.p. keep_prob else 0
    return mask * jnp.float32(1.0 / keep_prob)


def _flatten(x):
    B = int(x.shape[0])
    F = 1
    for d in x.shape[1:]:
        F *= int(d)
    return x.reshape(B, F), B, F


def drop_path(x, drop_prob: float = 0.0, training: bool = False, *,
              key=None, seed: int = 0):
    """Pallas DropPath. Identity when not training or drop_prob == 0."""
    if drop_prob == 0.0 or not training:
        return x
    if drop_prob >= 1.0:
        return jnp.zeros_like(x)  # keep_prob == 0 guard (avoid 0 * inf)

    x2, B, _ = _flatten(x)
    scale = _per_sample_scale(B, drop_prob, key, seed)
    out = _launch(_drop_path_kernel, [x2], scale, x.dtype)
    return out.reshape(x.shape)


def drop_path_add(residual, x, drop_prob: float = 0.0, training: bool = False,
                  *, key=None, seed: int = 0):
    """Fused `residual + drop_path(x)` — one HBM pass instead of two."""
    if drop_prob == 0.0 or not training:
        return residual + x
    if drop_prob >= 1.0:
        return residual

    x2, B, _ = _flatten(x)
    r2 = residual.reshape(x2.shape)
    scale = _per_sample_scale(B, drop_prob, key, seed)
    out = _launch(_drop_path_add_kernel, [r2, x2], scale, x.dtype)
    return out.reshape(x.shape)


class DropPath:
    """Mirror of the PyTorch module: holds drop_prob and a training flag."""

    def __init__(self, drop_prob=None):
        self.drop_prob = drop_prob if drop_prob is not None else 0.0
        self.training = True

    def __call__(self, x, seed: int = 0, key=None):
        return drop_path(x, self.drop_prob, self.training, key=key, seed=seed)


# ---------------------------------------------------------------------------
# Self-test
# ---------------------------------------------------------------------------

if __name__ == "__main__":
    root = jax.random.PRNGKey(0)
    k_x, k_mask, k_awk, k_bf16, k_res = jax.random.split(root, 5)

    drop_prob = 0.25
    keep_prob = 1.0 - drop_prob

    # --- 1) basic f32 training path: each sample is kept (x/keep_prob) or zero
    B, N, D = 2, 8, 32
    x = jax.random.normal(k_x, (B, N, D), dtype=jnp.float32)
    module = DropPath(drop_prob=drop_prob)
    y_train = jax.block_until_ready(module(x, key=k_mask))
    for b in range(B):
        sb = y_train[b]
        kept = bool(jnp.allclose(sb, x[b] / keep_prob, atol=1e-5, rtol=1e-5))
        dropped = bool(jnp.allclose(sb, 0.0))
        assert kept or dropped, f"sample {b} is neither kept nor dropped"

    # --- 2) eval path is exact identity (no kernel launch)
    module.training = False
    y_eval = jax.block_until_ready(module(x))
    assert jnp.array_equal(y_eval, x)

    # --- 3) drop_prob == 1.0: all zeros, no NaNs
    y_all_drop = jax.block_until_ready(drop_path(x, 1.0, True, key=k_mask))
    assert jnp.array_equal(y_all_drop, jnp.zeros_like(x))

    # --- 4) awkward shape (partial edge blocks via cdiv tiling) vs plain-JAX ref
    xa = jax.random.normal(k_awk, (10, 7, 33), dtype=jnp.float32)
    y_awk = jax.block_until_ready(drop_path(xa, drop_prob, True, key=k_mask))
    scale_ref = _per_sample_scale(10, drop_prob, k_mask, 0)
    y_ref = xa * scale_ref.reshape(10, 1, 1)
    assert jnp.allclose(y_awk, y_ref, atol=1e-5, rtol=1e-5)

    # --- 5) bf16 input: scale stays f32, multiply upcasts, result cast back
    xb = jax.random.normal(k_bf16, (16, 8, 32), dtype=jnp.bfloat16)
    y_bf16 = jax.block_until_ready(drop_path(xb, drop_prob, True, key=k_mask))
    scale_b = _per_sample_scale(16, drop_prob, k_mask, 0)
    y_bf16_ref = (xb.astype(jnp.float32) * scale_b.reshape(16, 1, 1)
                  ).astype(jnp.bfloat16)
    assert jnp.allclose(y_bf16.astype(jnp.float32),
                        y_bf16_ref.astype(jnp.float32), atol=1e-2, rtol=1e-2)

    # --- 6) fused residual add matches unfused residual + drop_path
    res = jax.random.normal(k_res, (B, N, D), dtype=jnp.float32)
    y_fused = jax.block_until_ready(
        drop_path_add(res, x, drop_prob, True, key=k_mask))
    y_unfused = res + drop_path(x, drop_prob, True, key=k_mask)
    assert jnp.allclose(y_fused, y_unfused, atol=1e-5, rtol=1e-5)

    print("KERNEL_OK")
</pallas_src>

<mosaic_0001>
module attributes {stable_mosaic.version = 11 : i64} {
  func.func @_drop_path_kernel(%arg0: i32, %arg1: i32, %arg2: memref<2x128xf32, #tpu.memory_space<vmem>>, %arg3: memref<2x1xf32, #tpu.memory_space<vmem>>, %arg4: memref<2x128xf32, #tpu.memory_space<vmem>>) attributes {dimension_semantics = [#tpu.dimension_semantics<parallel>, #tpu.dimension_semantics<parallel>], iteration_bounds = array<i64: 1, 2>, scalar_prefetch = 0 : i64, scratch_operands = 0 : i64, tpu.core_type = #tpu.core_type<tc>, window_params = [{transform_indices = @transform_0, window_bounds = array<i64: 2, 128>}, {transform_indices = @transform_1, window_bounds = array<i64: 2, 1>}, {transform_indices = @transform_2, window_bounds = array<i64: 2, 128>}]} {
    %c0 = arith.constant 0 : index
    %c0_0 = arith.constant 0 : index
    %0 = vector.load %arg2[%c0, %c0_0] : memref<2x128xf32, #tpu.memory_space<vmem>>, vector<2x128xf32>
    %c0_1 = arith.constant 0 : index
    %c0_2 = arith.constant 0 : index
    %1 = vector.load %arg3[%c0_1, %c0_2] : memref<2x1xf32, #tpu.memory_space<vmem>>, vector<2x1xf32>
    %2 = vector.broadcast %1 : vector<2x1xf32> to vector<2x128xf32>
    %3 = arith.mulf %0, %2 : vector<2x128xf32>
    %c0_3 = arith.constant 0 : index
    %c0_4 = arith.constant 0 : index
    %4 = vector.load %arg4[%c0_3, %c0_4] : memref<2x128xf32, #tpu.memory_space<vmem>>, vector<2x128xf32>
    tpu.vector_store %arg4[%c0_3, %c0_4], %3 {strides = array<i32>} : memref<2x128xf32, #tpu.memory_space<vmem>>, vector<2x128xf32>,
    return
  }
  func.func @transform_0(%arg0: i32, %arg1: i32) -> (i32, i32) {
    %c0_i32 = arith.constant 0 : i32
    return %arg0, %arg1 : i32, i32
  }
  func.func @transform_1(%arg0: i32, %arg1: i32) -> (i32, i32) {
    %c0_i32 = arith.constant 0 : i32
    %c0_i32_0 = arith.constant 0 : i32
    return %arg0, %c0_i32 : i32, i32
  }
  func.func @transform_2(%arg0: i32, %arg1: i32) -> (i32, i32) {
    %c0_i32 = arith.constant 0 : i32
    return %arg0, %arg1 : i32, i32
  }
}

</mosaic_0001>

<llo_original>
// kernel: tpu_custom_call.1
$region0: #{tpu_custom_call.1}
  #allocation0 [shape = 'u32[]', space=smem, size = 0x4, offset = 0x4, fixed_abs, tag = 'smem constant byte address 0x4 - core index']
  #allocation1 [shape = 'u32[144,128]{1,0:T(1,128)}', space=vmem, size = 0x12000, scoped, tag = 'internal scratch']
  %s0 = inlined_call_operand.hbm [shape: f32[2,256], index: 0, kind: input, shape index: {}]
  %s1 = inlined_call_operand.vmem [shape: f32[2,1], index: 1, kind: input, shape index: {}]
  %s2 = inlined_call_operand.hbm [shape: f32[2,256], index: 2, kind: output, shape index: {}]
  %s3 = sld [smem:[#allocation0]]
  $region45: #{tpu_custom_call.1} parent=0
    _
  %s5 = ssub.s32 1, %s3
  %s6 = scalar_select 0, %s5, %s3
  $region1: #{tpu_custom_call.1} parent=0
    #allocation2 [shape = 'u8[2048]{0}', space=vmem, size = 0x800, scoped, tag = 'input window, operand 0']
    #allocation3 [shape = 's32[2]{0}', space=sflag, size = 0x8, scoped, tag = 'scoped memory for tpu_custom_call.1']
    #allocation4 [shape = 's32[2]{0}', space=sflag, size = 0x8, scoped, tag = 'scoped memory for tpu_custom_call.1']
    #allocation5 [shape = 'u8[2048]{0}', space=vmem, size = 0x800, scoped, tag = 'output window, operand 0']
    %7 = vsyncpa [#allocation3], 0
    %s8 = scalar_lea.sflag [#allocation3], 1
    %9 = vsyncpa %s8, 0
    %10 = vsyncpa [#allocation4], 0
    %s11 = scalar_lea.sflag [#allocation4], 1
    %12 = vsyncpa %s11, 0
    loop: start=0, step=1, limit=4
    $region2: #{tpu_custom_call.1} parent=1 // loop_pre_header
      _
    $region3: #{tpu_custom_call.1} parent=1 // loop_header
      %s14 = sphi 0, %s18
      %p15 = scmp.ge.s32.totalorder %s14, 4
      %s21 = sphi 0, %s33
      %s22 = sphi 0, %s29
      %s23 = sphi 0, %s21
      %s24 = sphi 0, %s22
      %s25 = sphi 0, %s23
      %s26 = sphi 0, %s24
      %s38 = sphi 0, %s40
      %s41 = sphi 0, %s38
      %s42 = sphi 0, %s41
      %s58 = sphi 0, %s42
      %s64 = sphi 0, %s66
      %s67 = sphi 0, %s64
      %s68 = sphi 0, %s67
      %s84 = sphi 0, %s68
      %s92 = sphi 0, %s94
      %s95 = sphi 0, %s92
      %s96 = sphi 0, %s95
      %s112 = sphi 0, %s96
    $region4: #{tpu_custom_call.1} parent=1 // loop_header_branch
      %17 = sbr.rel (%p15) target = $region8
    $region5: #{tpu_custom_call.1} parent=1 // loop_body
      %s19 = ssub.s32 %s14, 1
      %s20 = ssub.s32 %s14, 2
      %s27 = sadd.s32 1, %s22
      %p28 = scmp.ge.s32.totalorder %s27, 2
      %s29 = scalar_select %p28, 0, %s27
      %s30 = sadd.s32 1, %s21
      %s31 = scalar_select %p28, %s30, %s21
      %p32 = scmp.ge.s32.totalorder %s31, 1
      %s33 = scalar_select %p32, 0, %s31
      %s34 = ssub.s32 %s21, %s33
      %s35 = ssub.s32 %s22, %s29
      %s36 = sor.u32 %s34, %s35
      %p37 = scmp.eq.s32.totalorder %s36, 0
      %s39 = sadd.s32 %s38, 1
      %s40 = scalar_select %p37, %s38, %s39
      %p43 = pneg %p37
      %p44 = scmp.eq.s32.totalorder %s14, 1
      %p45 = por %p43, %p44
      %p46 = scmp.ne.s32.totalorder %s38, %s41
      %p47 = scmp.eq.s32.totalorder %s14, 0
      %p48 = por %p46, %p47
      %p49 = scmp.ne.s32.totalorder %s38, %s41
      %p50 = scmp.eq.s32.totalorder %s19, 1
      %p51 = por %p49, %p50
      %p52 = scmp.ne.s32.totalorder %s41, %s42
      %p53 = scmp.eq.s32.totalorder %s19, 0
      %p54 = por %p52, %p53
      %p55 = scmp.ne.s32.totalorder %s41, %s42
      %p56 = scmp.eq.s32.totalorder %s20, 1
      %p57 = por %p55, %p56
      %p59 = scmp.ne.s32.totalorder %s42, %s58
      %p60 = scmp.eq.s32.totalorder %s20, 0
      %p61 = por %p59, %p60
      %s62 = ssub.s32 %s21, %s33
      %p63 = scmp.eq.s32.totalorder %s62, 0
      %s65 = sadd.s32 %s64, 1
      %s66 = scalar_select %p63, %s64, %s65
      %p69 = pneg %p63
      %p70 = scmp.eq.s32.totalorder %s14, 1
      %p71 = por %p69, %p70
      %p72 = scmp.ne.s32.totalorder %s64, %s67
      %p73 = scmp.eq.s32.totalorder %s14, 0
      %p74 = por %p72, %p73
      %p75 = scmp.ne.s32.totalorder %s64, %s67
      %p76 = scmp.eq.s32.totalorder %s19, 1
      %p77 = por %p75, %p76
      %p78 = scmp.ne.s32.totalorder %s67, %s68
      %p79 = scmp.eq.s32.totalorder %s19, 0
      %p80 = por %p78, %p79
      %p81 = scmp.ne.s32.totalorder %s67, %s68
      %p82 = scmp.eq.s32.totalorder %s20, 1
      %p83 = por %p81, %p82
      %p85 = scmp.ne.s32.totalorder %s68, %s84
      %p86 = scmp.eq.s32.totalorder %s20, 0
      %p87 = por %p85, %p86
      %s88 = ssub.s32 %s21, %s33
      %s89 = ssub.s32 %s22, %s29
      %s90 = sor.u32 %s88, %s89
      %p91 = scmp.eq.s32.totalorder %s90, 0
      %s93 = sadd.s32 %s92, 1
      %s94 = scalar_select %p91, %s92, %s93
      %p97 = pneg %p91
      %p98 = scmp.eq.s32.totalorder %s14, 1
      %p99 = por %p97, %p98
      %p100 = scmp.ne.s32.totalorder %s92, %s95
      %p101 = scmp.eq.s32.totalorder %s14, 0
      %p102 = por %p100, %p101
      %p103 = scmp.ne.s32.totalorder %s92, %s95
      %p104 = scmp.eq.s32.totalorder %s19, 1
      %p105 = por %p103, %p104
      %p106 = scmp.ne.s32.totalorder %s95, %s96
      %p107 = scmp.eq.s32.totalorder %s19, 0
      %p108 = por %p106, %p107
      %p109 = scmp.ne.s32.totalorder %s95, %s96
      %p110 = scmp.eq.s32.totalorder %s20, 1
      %p111 = por %p109, %p110
      %p113 = scmp.ne.s32.totalorder %s96, %s112
      %p114 = scmp.eq.s32.totalorder %s20, 0
      %p115 = por %p113, %p114
      %p116 = scmp.le.s32.totalorder 1, %s14
      %p117 = scmp.lt.s32.totalorder %s14, 3
      %p118 = pnand %p116, %p117
      %p119 = pneg %p118
      // Predicated region
      $region9: #{tpu_custom_call.1} parent=5 // pred_check
        _
      $region10: #{tpu_custom_call.1} parent=5 // pred_check_branch
        %121 = sbr.rel (%p118) target = $region12
      $region11: #{tpu_custom_call.1} parent=5 // pred_region
        %s122 = ssub.s32 %s14, 1
        // Predicated region
        $region13: #{tpu_custom_call.1} parent=11 // pred_check
          %p123 = pneg %p80
        $region14: #{tpu_custom_call.1} parent=11 // pred_check_branch
          %125 = sbr.rel (%p123) target = $region16
        $region15: #{tpu_custom_call.1} parent=11 // pred_region
          %p126 = scmp.lt.s32.totalorder %s23, 0
          %s127 = scalar_select %p126, %s23, 0
          %s128 = smul.addr %s127, 2
          %s129 = scalar_lea.vmem %s1, %s128
        $region16: #{tpu_custom_call.1} parent=11 // pred_fallthru
          _
      $region12: #{tpu_custom_call.1} parent=5 // pred_fallthru
        _
      %p130 = scmp.lt.s32.totalorder %s14, 2
      // Predicated region
      $region17: #{tpu_custom_call.1} parent=5 // pred_check
        %p131 = pneg %p130
      $region18: #{tpu_custom_call.1} parent=5 // pred_check_branch
        %133 = sbr.rel (%p131) target = $region20
      $region19: #{tpu_custom_call.1} parent=5 // pred_region
        // Predicated region
        $region21: #{tpu_custom_call.1} parent=19 // pred_check
          %p134 = pneg %p48
        $region22: #{tpu_custom_call.1} parent=19 // pred_check_branch
          %136 = sbr.rel (%p134) target = $region24
        $region23: #{tpu_custom_call.1} parent=19 // pred_region
          %s137 = sand.u32 %s38, 1
          %s138 = scalar_lea.sflag [#allocation3], %s137
          %s139 = sand.u32 %s38, 1
          %s140 = smul.addr %s139, 2
          %s141 = scalar_lea.vmem [#allocation2], %s140
          %s143 = ssub.s32 32, 32
          %144 = vsyncadd %s138, %s143
          %s145 = smul.addr %s21, 2
          %s146 = sadd.s32 %s22, %s145
          %s147 = smul.addr %s146, 32
          %s148 = scalar_lea.hbm %s0, %s147
          %s150 = sshll.u32 %s141, 4
          %s151 = int_to_ptr.vmem [resolvable:$true] %s150
          %153 = dma.hbm_to_vmem [thread:$0]  %s148, 32, %s151, %s138
        $region24: #{tpu_custom_call.1} parent=19 // pred_fallthru
          _
      $region20: #{tpu_custom_call.1} parent=5 // pred_fallthru
        _
      %p154 = scmp.le.s32.totalorder 1, %s14
      %p155 = scmp.lt.s32.totalorder %s14, 3
      %p156 = pnand %p154, %p155
      %p157 = pneg %p156
      // Predicated region
      $region25: #{tpu_custom_call.1} parent=5 // pred_check
        _
      $region26: #{tpu_custom_call.1} parent=5 // pred_check_branch
        %159 = sbr.rel (%p156) target = $region28
      $region27: #{tpu_custom_call.1} parent=5 // pred_region
        %s160 = ssub.s32 %s14, 1
        %s161 = sand.u32 %s41, 1
        %s162 = scalar_lea.sflag [#allocation3], %s161
        %s163 = sand.u32 %s41, 1
        %s164 = smul.addr %s163, 2
        %s165 = scalar_lea.vmem [#allocation2], %s164
        // Predicated region
        $region29: #{tpu_custom_call.1} parent=27 // pred_check
          %p166 = pneg %p54
        $region30: #{tpu_custom_call.1} parent=27 // pred_check_branch
          %168 = sbr.rel (%p166) target = $region32
        $region31: #{tpu_custom_call.1} parent=27 // pred_region
          %169 = dma.done %s162, 32
        $region32: #{tpu_custom_call.1} parent=27 // pred_fallthru
          _
        %s170 = sand.u32 %s41, 1
        %s171 = scalar_lea.sflag [#allocation3], %s170
        %s172 = sand.u32 %s41, 1
        %s173 = smul.addr %s172, 2
        %s174 = scalar_lea.vmem [#allocation2], %s173
        %p175 = pneg %p54
        %p176 = pneg %p51
        %p177 = scmp.lt.s32.totalorder %s23, 0
        %s178 = scalar_select %p177, %s23, 0
        %s179 = smul.addr %s178, 2
        %s180 = scalar_lea.vmem %s1, %s179
        %p181 = pneg %p80
        %p182 = pneg %p77
        %p183 = pneg %p108
        %p184 = pneg %p105
        %s185 = sand.u32 %s95, 1
        %s186 = scalar_lea.sflag [#allocation4], %s185
        %s187 = sand.u32 %s95, 1
        %s188 = smul.addr %s187, 2
        %s189 = scalar_lea.vmem [#allocation5], %s188
        %p190 = scmp.lt.s32.totalorder %s23, 0
        %s191 = scalar_select %p190, %s23, 0
        %s192 = smul.addr %s191, 2
        %s193 = scalar_lea.vmem %s1, %s192
        %v194 = vld [vmem:[%s165] sm:$0x3]
        %v195 = vld [vmem:[%s193] sm:$0x3]
        %197 = vset.pattern.permute.xlu0 0
        %198 = vperm.xlu0 %197, %v195
        %v199 = vpop.permute.xlu0 %198
        %v201 = vmul.f32 %v194, %v199
        %202 = vst [vmem:[%s189] sm:$0x3] %v201
        %s203 = sand.u32 %s95, 1
        %s204 = scalar_lea.sflag [#allocation4], %s203
        %s205 = sand.u32 %s95, 1
        %s206 = smul.addr %s205, 2
        %s207 = scalar_lea.vmem [#allocation5], %s206
        // Predicated region
        $region33: #{tpu_custom_call.1} parent=27 // pred_check
          %p208 = pneg %p105
        $region34: #{tpu_custom_call.1} parent=27 // pred_check_branch
          %210 = sbr.rel (%p208) target = $region36
        $region35: #{tpu_custom_call.1} parent=27 // pred_region
          %s212 = ssub.s32 32, 32
          %213 = vsyncadd %s204, %s212
          %s214 = smul.addr %s23, 2
          %s215 = sadd.s32 %s24, %s214
          %s216 = smul.addr %s215, 32
          %s217 = scalar_lea.hbm %s2, %s216
          %s219 = sshll.u32 %s207, 4
          %s220 = int_to_ptr.vmem [resolvable:$true] %s219
          %222 = dma.vmem_to_hbm [thread:$0]  %s220, 32, %s217, %s204
        $region36: #{tpu_custom_call.1} parent=27 // pred_fallthru
          _
      $region28: #{tpu_custom_call.1} parent=5 // pred_fallthru
        _
      %p223 = scmp.le.s32.totalorder 2, %s14
      // Predicated region
      $region37: #{tpu_custom_call.1} parent=5 // pred_check
        %p224 = pneg %p223
      $region38: #{tpu_custom_call.1} parent=5 // pred_check_branch
        %226 = sbr.rel (%p224) target = $region40
      $region39: #{tpu_custom_call.1} parent=5 // pred_region
        %s227 = ssub.s32 %s14, 2
        // Predicated region
        $region41: #{tpu_custom_call.1} parent=39 // pred_check
          %p228 = pneg %p111
        $region42: #{tpu_custom_call.1} parent=39 // pred_check_branch
          %230 = sbr.rel (%p228) target = $region44
        $region43: #{tpu_custom_call.1} parent=39 // pred_region
          %s231 = sand.u32 %s96, 1
          %s232 = scalar_lea.sflag [#allocation4], %s231
          %s233 = sand.u32 %s96, 1
          %s234 = smul.addr %s233, 2
          %s235 = scalar_lea.vmem [#allocation5], %s234
          %236 = dma.done %s232, 32
        $region44: #{tpu_custom_call.1} parent=39 // pred_fallthru
          _
      $region40: #{tpu_custom_call.1} parent=5 // pred_fallthru
        _
    $region6: #{tpu_custom_call.1} parent=1 // loop_footer
      %s18 = sadd.s32 1, %s14
    $region7: #{tpu_custom_call.1} parent=1 // loop_footer_branch
      %13 = sbr.rel target = $region3
    $region8: #{tpu_custom_call.1} parent=1 // loop_exit
      _
    %237 = vsyncpa [#allocation3], 1
    %s238 = scalar_lea.sflag [#allocation3], 1
    %239 = vsyncpa %s238, 1
    %240 = vsyncpa [#allocation4], 1
    %s241 = scalar_lea.sflag [#allocation4], 1
    %242 = vsyncpa %s241, 1

</llo_original>
